<compile_context>
chip_gen: v5e
topology: v5e:2x2
jax: 0.10.0
libtpu: 0.0.40
codegen_flags: <defaults>
</compile_context>

<pallas_src>
import jax
import jax.numpy as jnp
from jax import lax
from jax.experimental import pallas as pl
from jax.experimental.pallas import tpu as pltpu


def _round_up(x, m):
    return ((x + m - 1) // m) * m


def _mlp_kernel(x_ref, w1_ref, b1_ref, w2_ref, b2_ref, w3_ref, b3_ref, o_ref):
    # x is a (tile, obs_dim) slab of obs in its native layout; contract obs_dim
    # (last axis of both operands) so the result is (h1, tile): the batch stays
    # on the 128-lane axis for every layer and the final store is lane-dense.
    x = x_ref[...].astype(w1_ref.dtype)                       # (T, obs_dim)
    # Layer 1: Linear + ReLU  (y^T = W1 @ x^T, expressed as A @ B^T)
    h = lax.dot_general(w1_ref[...], x,
                        dimension_numbers=(((1,), (1,)), ((), ())),
                        preferred_element_type=jnp.float32)    # (h1, T) f32
    h = jnp.maximum(h + b1_ref[...], 0.0)
    # Layer 2: Linear + ReLU
    h = jnp.dot(w2_ref[...], h.astype(w2_ref.dtype),
                preferred_element_type=jnp.float32)            # (h2, T) f32
    h = jnp.maximum(h + b2_ref[...], 0.0)
    # Output layer: Linear + Identity
    v = jnp.dot(w3_ref[...], h.astype(w3_ref.dtype),
                preferred_element_type=jnp.float32)            # (1, T) f32
    o_ref[...] = (v + b3_ref[...]).astype(o_ref.dtype)


def _pick_tile(B, obs_dim, h1, h2, batch_tile, itemsize,
               vmem_budget_bytes=12 * 1024 * 1024):
    """Pick the batch tile: as big as the VMEM budget allows (to amortize the
    ~600-cycle per-grid-step overhead), but keep >= 2 grid steps when the batch
    allows so v7x's two TensorCores both get work.  The 12 MiB budget stays
    under the smallest scoped-VMEM default (16 MiB on v5e) and far under v7x's
    64 MiB physical VMEM."""
    # Rough per-lane VMEM bytes: double-buffered obs + output tiles, f32 hidden
    # activations, plus compute-dtype copies of obs / activations.
    per_lane = (4 * (2 * obs_dim + 2 + 2 * (h1 + h2))
                + itemsize * (obs_dim + h1 + h2))
    vmem_cap = max(128, (vmem_budget_bytes // per_lane) // 128 * 128)
    tile_cap = max(128, min(_round_up(batch_tile, 128), vmem_cap))

    steps = max(1, pl.cdiv(B, tile_cap))
    if steps == 1 and B > 256:
        steps = 2                      # shard the batch across both TCs on v7x
    tile = max(128, min(_round_up(pl.cdiv(B, steps), 128), tile_cap))
    return tile


def state_value_forward(obs, params, *, batch_tile=8192,
                        compute_dtype=jnp.float32):
    """obs: (B, obs_dim) f32.

    params: PyTorch-Linear layout -- w{k}: (out_features, in_features),
            b{k}: (out_features, 1).
    Returns (B,) state values, matching torch.squeeze(v, -1).
    """
    B, obs_dim = obs.shape
    w1, b1 = params["w1"], params["b1"]
    w2, b2 = params["w2"], params["b2"]
    w3, b3 = params["w3"], params["b3"]
    h1, h2 = w1.shape[0], w2.shape[0]

    itemsize = jnp.dtype(compute_dtype).itemsize
    tile = _pick_tile(B, obs_dim, h1, h2, batch_tile, itemsize)
    grid = (pl.cdiv(B, tile),)         # partial last block; no batch padding

    # Weights/biases are tiny and resident; wrapper casts on them are
    # negligible.  obs is NOT touched in the wrapper, so it is read from HBM
    # exactly once (inside the kernel).
    w1c = w1.astype(compute_dtype)
    w2c = w2.astype(compute_dtype)
    w3c = w3.astype(compute_dtype)
    b1f = b1.astype(jnp.float32)
    b2f = b2.astype(jnp.float32)
    b3f = b3.astype(jnp.float32)

    full = lambda a: pl.BlockSpec(a.shape, lambda i: (0, 0))

    flops = 2 * B * (obs_dim * h1 + h1 * h2 + h2)
    bytes_accessed = (
        B * obs_dim * obs.dtype.itemsize                     # obs (read once)
        + (w1c.size + w2c.size + w3c.size) * itemsize        # weights
        + (b1f.size + b2f.size + b3f.size) * 4               # biases
        + B * 4)                                             # output
    cost = pl.CostEstimate(flops=int(flops), transcendentals=0,
                           bytes_accessed=int(bytes_accessed))

    out = pl.pallas_call(
        _mlp_kernel,
        out_shape=jax.ShapeDtypeStruct((1, B), jnp.float32),
        grid_spec=pltpu.PrefetchScalarGridSpec(
            num_scalar_prefetch=0,
            grid=grid,
            in_specs=[
                pl.BlockSpec((tile, obs_dim), lambda i: (i, 0)),  # obs, native
                full(w1c), full(b1f),
                full(w2c), full(b2f),
                full(w3c), full(b3f),
            ],
            out_specs=pl.BlockSpec((1, tile), lambda i: (0, i)),  # lane-dense
        ),
        compiler_params=pltpu.CompilerParams(
            dimension_semantics=("parallel",),
        ),
        cost_estimate=cost,
    )(obs, w1c, b1f, w2c, b2f, w3c, b3f)

    # (1, B) -> (B,)   (== torch.squeeze(v, -1))
    return jnp.reshape(out, (B,))


def init_params(key, obs_dim, hidden_sizes):
    """PyTorch-Linear-style init & layout: W (out, in) ~ U(-1/sqrt(fan_in), .),
    b (out, 1)."""
    sizes = [obs_dim] + list(hidden_sizes) + [1]
    params = {}
    for j in range(len(sizes) - 1):
        fan_in, fan_out = sizes[j], sizes[j + 1]
        key, kw, kb = jax.random.split(key, 3)
        bound = 1.0 / (fan_in ** 0.5)
        params[f"w{j+1}"] = jax.random.uniform(
            kw, (fan_out, fan_in), jnp.float32, -bound, bound)
        params[f"b{j+1}"] = jax.random.uniform(
            kb, (fan_out, 1), jnp.float32, -bound, bound)
    return params


def _reference(obs, params):
    h = jnp.maximum(obs @ params["w1"].T + params["b1"].T, 0.0)
    h = jnp.maximum(h @ params["w2"].T + params["b2"].T, 0.0)
    v = h @ params["w3"].T + params["b3"].T
    return jnp.squeeze(v, axis=-1)


if __name__ == "__main__":
    key = jax.random.PRNGKey(0)
    obs_dim = 16
    hidden_sizes = (32, 32)
    batch = 600  # not a multiple of 128 -> exercises partial block + 2-step grid

    k_obs, k_par = jax.random.split(key)
    obs = jax.random.normal(k_obs, (batch, obs_dim), jnp.float32)
    params = init_params(k_par, obs_dim, hidden_sizes)

    v_ref = _reference(obs, params)

    # f32 compute path (exact vs reference).
    v = jax.block_until_ready(state_value_forward(obs, params))
    assert v.shape == (batch,), v.shape
    assert jnp.allclose(v, v_ref, atol=1e-5, rtol=1e-5)

    # bf16 MXU path (obs cast in-kernel), f32 accumulation -> loose tolerance.
    v_bf16 = jax.block_until_ready(
        state_value_forward(obs, params, compute_dtype=jnp.bfloat16))
    assert v_bf16.shape == (batch,), v_bf16.shape
    assert jnp.allclose(v_bf16, v_ref, atol=5e-2, rtol=5e-2)

    print("KERNEL_OK")
</pallas_src>

<mosaic_0001>
module attributes {stable_mosaic.version = 11 : i64} {
  func.func @_mlp_kernel(%arg0: i32, %arg1: memref<384x16xf32, #tpu.memory_space<vmem>>, %arg2: memref<32x16xf32, #tpu.memory_space<vmem>>, %arg3: memref<32x1xf32, #tpu.memory_space<vmem>>, %arg4: memref<32x32xf32, #tpu.memory_space<vmem>>, %arg5: memref<32x1xf32, #tpu.memory_space<vmem>>, %arg6: memref<1x32xf32, #tpu.memory_space<vmem>>, %arg7: memref<1x1xf32, #tpu.memory_space<vmem>>, %arg8: memref<1x384xf32, #tpu.memory_space<vmem>>) attributes {dimension_semantics = [#tpu.dimension_semantics<parallel>], iteration_bounds = array<i64: 2>, scalar_prefetch = 0 : i64, scratch_operands = 0 : i64, tpu.core_type = #tpu.core_type<tc>, window_params = [{transform_indices = @transform_0, window_bounds = array<i64: 384, 16>}, {pipeline_mode = #tpu.pipeline_mode<synchronous>, transform_indices = @transform_1, window_bounds = array<i64: 32, 16>}, {pipeline_mode = #tpu.pipeline_mode<synchronous>, transform_indices = @transform_2, window_bounds = array<i64: 32, 1>}, {pipeline_mode = #tpu.pipeline_mode<synchronous>, transform_indices = @transform_3, window_bounds = array<i64: 32, 32>}, {pipeline_mode = #tpu.pipeline_mode<synchronous>, transform_indices = @transform_4, window_bounds = array<i64: 32, 1>}, {pipeline_mode = #tpu.pipeline_mode<synchronous>, transform_indices = @transform_5, window_bounds = array<i64: 1, 32>}, {pipeline_mode = #tpu.pipeline_mode<synchronous>, transform_indices = @transform_6, window_bounds = array<i64: 1, 1>}, {transform_indices = @transform_7, window_bounds = array<i64: 1, 384>}]} {
    %c0 = arith.constant 0 : index
    %c0_0 = arith.constant 0 : index
    %0 = vector.load %arg1[%c0, %c0_0] : memref<384x16xf32, #tpu.memory_space<vmem>>, vector<384x16xf32>
    %c0_1 = arith.constant 0 : index
    %c0_2 = arith.constant 0 : index
    %1 = vector.load %arg2[%c0_1, %c0_2] : memref<32x16xf32, #tpu.memory_space<vmem>>, vector<32x16xf32>
    %cst = arith.constant dense<0.000000e+00> : vector<32x384xf32>
    %2 = tpu.matmul %1, %0, %cst {dimension_numbers = #tpu.dot_dimension_numbers<[1], [1], [0], [0], [0, 0, 1, 0], [], []>} : vector<32x16xf32>, vector<384x16xf32>, vector<32x384xf32> -> vector<32x384xf32>
    %c0_3 = arith.constant 0 : index
    %c0_4 = arith.constant 0 : index
    %3 = vector.load %arg3[%c0_3, %c0_4] : memref<32x1xf32, #tpu.memory_space<vmem>>, vector<32x1xf32>
    %4 = vector.broadcast %3 : vector<32x1xf32> to vector<32x384xf32>
    %5 = arith.addf %2, %4 : vector<32x384xf32>
    %cst_5 = arith.constant 0.000000e+00 : f32
    %6 = vector.broadcast %cst_5 : f32 to vector<32x384xf32>
    %7 = arith.maximumf %5, %6 : vector<32x384xf32>
    %c0_6 = arith.constant 0 : index
    %c0_7 = arith.constant 0 : index
    %8 = vector.load %arg4[%c0_6, %c0_7] : memref<32x32xf32, #tpu.memory_space<vmem>>, vector<32x32xf32>
    %cst_8 = arith.constant dense<0.000000e+00> : vector<32x384xf32>
    %9 = tpu.matmul %8, %7, %cst_8 {dimension_numbers = #tpu.dot_dimension_numbers<[1], [0], [0], [1], [0, 0, 1, 1], [], []>} : vector<32x32xf32>, vector<32x384xf32>, vector<32x384xf32> -> vector<32x384xf32>
    %c0_9 = arith.constant 0 : index
    %c0_10 = arith.constant 0 : index
    %10 = vector.load %arg5[%c0_9, %c0_10] : memref<32x1xf32, #tpu.memory_space<vmem>>, vector<32x1xf32>
    %11 = vector.broadcast %10 : vector<32x1xf32> to vector<32x384xf32>
    %12 = arith.addf %9, %11 : vector<32x384xf32>
    %cst_11 = arith.constant 0.000000e+00 : f32
    %13 = vector.broadcast %cst_11 : f32 to vector<32x384xf32>
    %14 = arith.maximumf %12, %13 : vector<32x384xf32>
    %c0_12 = arith.constant 0 : index
    %c0_13 = arith.constant 0 : index
    %15 = vector.load %arg6[%c0_12, %c0_13] : memref<1x32xf32, #tpu.memory_space<vmem>>, vector<1x32xf32>
    %cst_14 = arith.constant dense<0.000000e+00> : vector<1x384xf32>
    %16 = tpu.matmul %15, %14, %cst_14 {dimension_numbers = #tpu.dot_dimension_numbers<[1], [0], [0], [1], [0, 0, 1, 1], [], []>} : vector<1x32xf32>, vector<32x384xf32>, vector<1x384xf32> -> vector<1x384xf32>
    %c0_15 = arith.constant 0 : index
    %c0_16 = arith.constant 0 : index
    %17 = vector.load %arg7[%c0_15, %c0_16] : memref<1x1xf32, #tpu.memory_space<vmem>>, vector<1x1xf32>
    %18 = vector.broadcast %17 : vector<1x1xf32> to vector<1x384xf32>
    %19 = arith.addf %16, %18 : vector<1x384xf32>
    %c0_17 = arith.constant 0 : index
    %c0_18 = arith.constant 0 : index
    %20 = vector.load %arg8[%c0_17, %c0_18] : memref<1x384xf32, #tpu.memory_space<vmem>>, vector<1x384xf32>
    tpu.vector_store %arg8[%c0_17, %c0_18], %19 {strides = array<i32>} : memref<1x384xf32, #tpu.memory_space<vmem>>, vector<1x384xf32>,
    return
  }
  func.func @transform_0(%arg0: i32) -> (i32, i32) {
    %c0_i32 = arith.constant 0 : i32
    %c0_i32_0 = arith.constant 0 : i32
    return %arg0, %c0_i32 : i32, i32
  }
  func.func @transform_1(%arg0: i32) -> (i32, i32) {
    %c0_i32 = arith.constant 0 : i32
    %c0_i32_0 = arith.constant 0 : i32
    %c0_i32_1 = arith.constant 0 : i32
    return %c0_i32, %c0_i32_0 : i32, i32
  }
  func.func @transform_2(%arg0: i32) -> (i32, i32) {
    %c0_i32 = arith.constant 0 : i32
    %c0_i32_0 = arith.constant 0 : i32
    %c0_i32_1 = arith.constant 0 : i32
    return %c0_i32, %c0_i32_0 : i32, i32
  }
  func.func @transform_3(%arg0: i32) -> (i32, i32) {
    %c0_i32 = arith.constant 0 : i32
    %c0_i32_0 = arith.constant 0 : i32
    %c0_i32_1 = arith.constant 0 : i32
    return %c0_i32, %c0_i32_0 : i32, i32
  }
  func.func @transform_4(%arg0: i32) -> (i32, i32) {
    %c0_i32 = arith.constant 0 : i32
    %c0_i32_0 = arith.constant 0 : i32
    %c0_i32_1 = arith.constant 0 : i32
    return %c0_i32, %c0_i32_0 : i32, i32
  }
  func.func @transform_5(%arg0: i32) -> (i32, i32) {
    %c0_i32 = arith.constant 0 : i32
    %c0_i32_0 = arith.constant 0 : i32
    %c0_i32_1 = arith.constant 0 : i32
    return %c0_i32, %c0_i32_0 : i32, i32
  }
  func.func @transform_6(%arg0: i32) -> (i32, i32) {
    %c0_i32 = arith.constant 0 : i32
    %c0_i32_0 = arith.constant 0 : i32
    %c0_i32_1 = arith.constant 0 : i32
    return %c0_i32, %c0_i32_0 : i32, i32
  }
  func.func @transform_7(%arg0: i32) -> (i32, i32) {
    %c0_i32 = arith.constant 0 : i32
    %c0_i32_0 = arith.constant 0 : i32
    return %c0_i32, %arg0 : i32, i32
  }
}

</mosaic_0001>

<llo_original>
// kernel: tpu_custom_call.1
$region0: #{tpu_custom_call.1}
  #allocation0 [shape = 'u32[]', space=smem, size = 0x4, offset = 0x4, fixed_abs, tag = 'smem constant byte address 0x4 - core index']
  #allocation1 [shape = 'u32[72,128]{1,0:T(1,128)}', space=vmem, size = 0x9000, scoped, tag = 'internal scratch']
  #allocation2 [shape = 'f32[1,1]{1,0:T(1,128)S(1)}', space=vmem, size = 0x200, scoped, tag = 'scoped memory for tpu_custom_call.1']
  %s0 = inlined_call_operand.vmem [shape: f32[600,16], index: 0, kind: input, shape index: {}]
  %s1 = inlined_call_operand.vmem [shape: f32[32,16], index: 1, kind: input, shape index: {}]
  %s2 = inlined_call_operand.vmem [shape: f32[32,1], index: 2, kind: input, shape index: {}]
  %s3 = inlined_call_operand.vmem [shape: f32[32,32], index: 3, kind: input, shape index: {}]
  %s4 = inlined_call_operand.vmem [shape: f32[32,1], index: 4, kind: input, shape index: {}]
  %s5 = inlined_call_operand.vmem [shape: f32[1,32], index: 5, kind: input, shape index: {}]
  %s6 = inlined_call_operand.<no memory space> [shape: f32[1,1], index: 6, kind: input, shape index: {}]
  %s7 = inlined_call_operand.hbm [shape: f32[1,600], index: 7, kind: output, shape index: {}]
  %s8 = sld [smem:[#allocation0]]
  $region61: #{tpu_custom_call.1} parent=0
    _
  %s10 = ssub.s32 1, %s8
  %s11 = scalar_select 0, %s10, %s8
  %v12 = vstv %s6
  %13 = vst [vmem:[#allocation2] sm:$0x1] %v12
  $region1: #{tpu_custom_call.1} parent=0
    #allocation3 [shape = 'u8[3072]{0}', space=vmem, size = 0xc00, scoped, tag = 'output window, operand 0']
    #allocation4 [shape = 's32[2]{0}', space=sflag, size = 0x8, scoped, tag = 'scoped memory for tpu_custom_call.1']
    %14 = vsyncpa [#allocation4], 0
    %s15 = scalar_lea.sflag [#allocation4], 1
    %16 = vsyncpa %s15, 0
    loop: start=0, step=1, limit=4
    $region2: #{tpu_custom_call.1} parent=1 // loop_pre_header
      _
    $region3: #{tpu_custom_call.1} parent=1 // loop_header
      %s18 = sphi 0, %s22
      %p19 = scmp.ge.s32.totalorder %s18, 4
      %s28 = sphi 0, %s30
      %s31 = sphi 0, %s28
      %s32 = sphi 0, %s31
      %s48 = sphi 0, %s32
      %s52 = sphi 0, %s52
      %s54 = sphi 0, %s52
      %s55 = sphi 0, %s54
      %s69 = sphi 0, %s55
      %s73 = sphi 0, %s73
      %s75 = sphi 0, %s73
      %s76 = sphi 0, %s75
      %s90 = sphi 0, %s76
      %s94 = sphi 0, %s94
      %s96 = sphi 0, %s94
      %s97 = sphi 0, %s96
      %s111 = sphi 0, %s97
      %s115 = sphi 0, %s115
      %s117 = sphi 0, %s115
      %s118 = sphi 0, %s117
      %s132 = sphi 0, %s118
      %s136 = sphi 0, %s136
      %s138 = sphi 0, %s136
      %s139 = sphi 0, %s138
      %s153 = sphi 0, %s139
      %s157 = sphi 0, %s157
      %s159 = sphi 0, %s157
      %s160 = sphi 0, %s159
      %s174 = sphi 0, %s160
      %s180 = sphi 0, %s182
      %s183 = sphi 0, %s180
      %s184 = sphi 0, %s183
      %s200 = sphi 0, %s184
    $region4: #{tpu_custom_call.1} parent=1 // loop_header_branch
      %21 = sbr.rel (%p19) target = $region8
    $region5: #{tpu_custom_call.1} parent=1 // loop_body
      %s23 = ssub.s32 %s18, 1
      %s24 = ssub.s32 %s18, 2
      %s25 = sadd.s32 %s18, 1
      %s26 = ssub.s32 %s18, %s25
      %p27 = scmp.eq.s32.totalorder %s26, 0
      %s29 = sadd.s32 %s28, 1
      %s30 = scalar_select %p27, %s28, %s29
      %p33 = pneg %p27
      %p34 = scmp.eq.s32.totalorder %s18, 1
      %p35 = por %p33, %p34
      %p36 = scmp.ne.s32.totalorder %s28, %s31
      %p37 = scmp.eq.s32.totalorder %s18, 0
      %p38 = por %p36, %p37
      %p39 = scmp.ne.s32.totalorder %s28, %s31
      %p40 = scmp.eq.s32.totalorder %s23, 1
      %p41 = por %p39, %p40
      %p42 = scmp.ne.s32.totalorder %s31, %s32
      %p43 = scmp.eq.s32.totalorder %s23, 0
      %p44 = por %p42, %p43
      %p45 = scmp.ne.s32.totalorder %s31, %s32
      %p46 = scmp.eq.s32.totalorder %s24, 1
      %p47 = por %p45, %p46
      %p49 = scmp.ne.s32.totalorder %s32, %s48
      %p50 = scmp.eq.s32.totalorder %s24, 0
      %p51 = por %p49, %p50
      %s53 = sadd.s32 %s52, 1
      %p56 = scmp.eq.s32.totalorder %s18, 1
      %p57 = scmp.ne.s32.totalorder %s52, %s54
      %p58 = scmp.eq.s32.totalorder %s18, 0
      %p59 = por %p57, %p58
      %p60 = scmp.ne.s32.totalorder %s52, %s54
      %p61 = scmp.eq.s32.totalorder %s23, 1
      %p62 = por %p60, %p61
      %p63 = scmp.ne.s32.totalorder %s54, %s55
      %p64 = scmp.eq.s32.totalorder %s23, 0
      %p65 = por %p63, %p64
      %p66 = scmp.ne.s32.totalorder %s54, %s55
      %p67 = scmp.eq.s32.totalorder %s24, 1
      %p68 = por %p66, %p67
      %p70 = scmp.ne.s32.totalorder %s55, %s69
      %p71 = scmp.eq.s32.totalorder %s24, 0
      %p72 = por %p70, %p71
      %s74 = sadd.s32 %s73, 1
      %p77 = scmp.eq.s32.totalorder %s18, 1
      %p78 = scmp.ne.s32.totalorder %s73, %s75
      %p79 = scmp.eq.s32.totalorder %s18, 0
      %p80 = por %p78, %p79
      %p81 = scmp.ne.s32.totalorder %s73, %s75
      %p82 = scmp.eq.s32.totalorder %s23, 1
      %p83 = por %p81, %p82
      %p84 = scmp.ne.s32.totalorder %s75, %s76
      %p85 = scmp.eq.s32.totalorder %s23, 0
      %p86 = por %p84, %p85
      %p87 = scmp.ne.s32.totalorder %s75, %s76
      %p88 = scmp.eq.s32.totalorder %s24, 1
      %p89 = por %p87, %p88
      %p91 = scmp.ne.s32.totalorder %s76, %s90
      %p92 = scmp.eq.s32.totalorder %s24, 0
      %p93 = por %p91, %p92
      %s95 = sadd.s32 %s94, 1
      %p98 = scmp.eq.s32.totalorder %s18, 1
      %p99 = scmp.ne.s32.totalorder %s94, %s96
      %p100 = scmp.eq.s32.totalorder %s18, 0
      %p101 = por %p99, %p100
      %p102 = scmp.ne.s32.totalorder %s94, %s96
      %p103 = scmp.eq.s32.totalorder %s23, 1
      %p104 = por %p102, %p103
      %p105 = scmp.ne.s32.totalorder %s96, %s97
      %p106 = scmp.eq.s32.totalorder %s23, 0
      %p107 = por %p105, %p106
      %p108 = scmp.ne.s32.totalorder %s96, %s97
      %p109 = scmp.eq.s32.totalorder %s24, 1
      %p110 = por %p108, %p109
      %p112 = scmp.ne.s32.totalorder %s97, %s111
      %p113 = scmp.eq.s32.totalorder %s24, 0
      %p114 = por %p112, %p113
      %s116 = sadd.s32 %s115, 1
      %p119 = scmp.eq.s32.totalorder %s18, 1
      %p120 = scmp.ne.s32.totalorder %s115, %s117
      %p121 = scmp.eq.s32.totalorder %s18, 0
      %p122 = por %p120, %p121
      %p123 = scmp.ne.s32.totalorder %s115, %s117
      %p124 = scmp.eq.s32.totalorder %s23, 1
      %p125 = por %p123, %p124
      %p126 = scmp.ne.s32.totalorder %s117, %s118
      %p127 = scmp.eq.s32.totalorder %s23, 0
      %p128 = por %p126, %p127
      %p129 = scmp.ne.s32.totalorder %s117, %s118
      %p130 = scmp.eq.s32.totalorder %s24, 1
      %p131 = por %p129, %p130
      %p133 = scmp.ne.s32.totalorder %s118, %s132
      %p134 = scmp.eq.s32.totalorder %s24, 0
      %p135 = por %p133, %p134
      %s137 = sadd.s32 %s136, 1
      %p140 = scmp.eq.s32.totalorder %s18, 1
      %p141 = scmp.ne.s32.totalorder %s136, %s138
      %p142 = scmp.eq.s32.totalorder %s18, 0
      %p143 = por %p141, %p142
      %p144 = scmp.ne.s32.totalorder %s136, %s138
      %p145 = scmp.eq.s32.totalorder %s23, 1
      %p146 = por %p144, %p145
      %p147 = scmp.ne.s32.totalorder %s138, %s139
      %p148 = scmp.eq.s32.totalorder %s23, 0
      %p149 = por %p147, %p148
      %p150 = scmp.ne.s32.totalorder %s138, %s139
      %p151 = scmp.eq.s32.totalorder %s24, 1
      %p152 = por %p150, %p151
      %p154 = scmp.ne.s32.totalorder %s139, %s153
      %p155 = scmp.eq.s32.totalorder %s24, 0
      %p156 = por %p154, %p155
      %s158 = sadd.s32 %s157, 1
      %p161 = scmp.eq.s32.totalorder %s18, 1
      %p162 = scmp.ne.s32.totalorder %s157, %s159
      %p163 = scmp.eq.s32.totalorder %s18, 0
      %p164 = por %p162, %p163
      %p165 = scmp.ne.s32.totalorder %s157, %s159
      %p166 = scmp.eq.s32.totalorder %s23, 1
      %p167 = por %p165, %p166
      %p168 = scmp.ne.s32.totalorder %s159, %s160
      %p169 = scmp.eq.s32.totalorder %s23, 0
      %p170 = por %p168, %p169
      %p171 = scmp.ne.s32.totalorder %s159, %s160
      %p172 = scmp.eq.s32.totalorder %s24, 1
      %p173 = por %p171, %p172
      %p175 = scmp.ne.s32.totalorder %s160, %s174
      %p176 = scmp.eq.s32.totalorder %s24, 0
      %p177 = por %p175, %p176
      %s178 = ssub.s32 %s18, %s25
      %p179 = scmp.eq.s32.totalorder %s178, 0
      %s181 = sadd.s32 %s180, 1
      %s182 = scalar_select %p179, %s180, %s181
      %p185 = pneg %p179
      %p186 = scmp.eq.s32.totalorder %s18, 1
      %p187 = por %p185, %p186
      %p188 = scmp.ne.s32.totalorder %s180, %s183
      %p189 = scmp.eq.s32.totalorder %s18, 0
      %p190 = por %p188, %p189
      %p191 = scmp.ne.s32.totalorder %s180, %s183
      %p192 = scmp.eq.s32.totalorder %s23, 1
      %p193 = por %p191, %p192
      %p194 = scmp.ne.s32.totalorder %s183, %s184
      %p195 = scmp.eq.s32.totalorder %s23, 0
      %p196 = por %p194, %p195
      %p197 = scmp.ne.s32.totalorder %s183, %s184
      %p198 = scmp.eq.s32.totalorder %s24, 1
      %p199 = por %p197, %p198
      %p201 = scmp.ne.s32.totalorder %s184, %s200
      %p202 = scmp.eq.s32.totalorder %s24, 0
      %p203 = por %p201, %p202
      %p204 = scmp.le.s32.totalorder 1, %s18
      %p205 = scmp.lt.s32.totalorder %s18, 3
      %p206 = pnand %p204, %p205
      %p207 = pneg %p206
      // Predicated region
      $region9: #{tpu_custom_call.1} parent=5 // pred_check
        _
      $region10: #{tpu_custom_call.1} parent=5 // pred_check_branch
        %209 = sbr.rel (%p206) target = $region12
      $region11: #{tpu_custom_call.1} parent=5 // pred_region
        %s210 = ssub.s32 %s18, 1
        // Predicated region
        $region13: #{tpu_custom_call.1} parent=11 // pred_check
          %p211 = pneg %p65
        $region14: #{tpu_custom_call.1} parent=11 // pred_check_branch
          %213 = sbr.rel (%p211) target = $region16
        $region15: #{tpu_custom_call.1} parent=11 // pred_region
          _
        $region16: #{tpu_custom_call.1} parent=11 // pred_fallthru
          _
        // Predicated region
        $region17: #{tpu_custom_call.1} parent=11 // pred_check
          %p214 = pneg %p86
        $region18: #{tpu_custom_call.1} parent=11 // pred_check_branch
          %216 = sbr.rel (%p214) target = $region20
        $region19: #{tpu_custom_call.1} parent=11 // pred_region
          _
        $region20: #{tpu_custom_call.1} parent=11 // pred_fallthru
          _
        // Predicated region
        $region21: #{tpu_custom_call.1} parent=11 // pred_check
          %p217 = pneg %p107
        $region22: #{tpu_custom_call.1} parent=11 // pred_check_branch
          %219 = sbr.rel (%p217) target = $region24
        $region23: #{tpu_custom_call.1} parent=11 // pred_region
          _
        $region24: #{tpu_custom_call.1} parent=11 // pred_fallthru
          _
        // Predicated region
        $region25: #{tpu_custom_call.1} parent=11 // pred_check
          %p220 = pneg %p128
        $region26: #{tpu_custom_call.1} parent=11 // pred_check_branch
          %222 = sbr.rel (%p220) target = $region28
        $region27: #{tpu_custom_call.1} parent=11 // pred_region
          _
        $region28: #{tpu_custom_call.1} parent=11 // pred_fallthru
          _
        // Predicated region
        $region29: #{tpu_custom_call.1} parent=11 // pred_check
          %p223 = pneg %p149
        $region30: #{tpu_custom_call.1} parent=11 // pred_check_branch
          %225 = sbr.rel (%p223) target = $region32
        $region31: #{tpu_custom_call.1} parent=11 // pred_region
          _
        $region32: #{tpu_custom_call.1} parent=11 // pred_fallthru
          _
        // Predicated region
        $region33: #{tpu_custom_call.1} parent=11 // pred_check
          %p226 = pneg %p170
        $region34: #{tpu_custom_call.1} parent=11 // pred_check_branch
          %228 = sbr.rel (%p226) target = $region36
        $region35: #{tpu_custom_call.1} parent=11 // pred_region
          _
        $region36: #{tpu_custom_call.1} parent=11 // pred_fallthru
          _
      $region12: #{tpu_custom_call.1} parent=5 // pred_fallthru
        _
      %p229 = scmp.lt.s32.totalorder %s18, 2
      // Predicated region
      $region37: #{tpu_custom_call.1} parent=5 // pred_check
        %p230 = pneg %p229
      $region38: #{tpu_custom_call.1} parent=5 // pred_check_branch
        %232 = sbr.rel (%p230) target = $region40
      $region39: #{tpu_custom_call.1} parent=5 // pred_region
        // Predicated region
        $region41: #{tpu_custom_call.1} parent=39 // pred_check
          %p233 = pneg %p38
        $region42: #{tpu_custom_call.1} parent=39 // pred_check_branch
          %235 = sbr.rel (%p233) target = $region44
        $region43: #{tpu_custom_call.1} parent=39 // pred_region
          %s236 = smul.u32 48, %s18
          %s237 = ssub.s32 75, %s236
          %p238 = scmp.lt.s32.totalorder %s237, 48
          %s239 = scalar_select %p238, %s237, 48
          %s240 = smul.u32 8, %s239
          %p241 = scmp.lt.s32.totalorder %s236, 74
          %s242 = scalar_select %p241, %s236, 74
          %s243 = smul.addr %s242, 8
          %s244 = scalar_lea.vmem %s0, %s243
          %s245 = smul.u32 48, %s18
          %s246 = ssub.s32 75, %s245
          %p247 = scmp.lt.s32.totalorder %s246, 48
          %s248 = scalar_select %p247, %s246, 48
          %s249 = smul.u32 8, %s248
        $region44: #{tpu_custom_call.1} parent=39 // pred_fallthru
          _
      $region40: #{tpu_custom_call.1} parent=5 // pred_fallthru
        _
      %p250 = scmp.le.s32.totalorder 1, %s18
      %p251 = scmp.lt.s32.totalorder %s18, 3
      %p252 = pnand %p250, %p251
      %p253 = pneg %p252
      // Predicated region
      $region45: #{tpu_custom_call.1} parent=5 // pred_check
        _
      $region46: #{tpu_custom_call.1} parent=5 // pred_check_branch
        %255 = sbr.rel (%p252) target = $region48
      $region47: #{tpu_custom_call.1} parent=5 // pred_region
        %s256 = ssub.s32 %s18, 1
        %s257 = smul.u32 48, %s23
        %s258 = ssub.s32 75, %s257
        %p259 = scmp.lt.s32.totalorder %s258, 48
        %s260 = scalar_select %p259, %s258, 48
        %s261 = smul.u32 8, %s260
        %p262 = scmp.lt.s32.totalorder %s257, 74
        %s263 = scalar_select %p262, %s257, 74
        %s264 = smul.addr %s263, 8
        %s265 = scalar_lea.vmem %s0, %s264
        %p266 = pneg %p44
        %p267 = pneg %p41
        %p268 = pneg %p65
        %p269 = pneg %p62
        %p270 = pneg %p86
        %p271 = pneg %p83
        %p272 = pneg %p107
        %p273 = pneg %p104
        %p274 = pneg %p128
        %p275 = pneg %p125
        %p276 = pneg %p149
        %p277 = pneg %p146
        %p278 = pneg %p170
        %p279 = pneg %p167
        %p280 = pneg %p196
        %p281 = pneg %p193
        %s282 = sand.u32 %s183, 1
        %s283 = scalar_lea.sflag [#allocation4], %s282
        %s284 = sand.u32 %s183, 1
        %s285 = smul.addr %s284, 3
        %s286 = scalar_lea.vmem [#allocation3], %s285
        %s287 = smul.u32 48, %s23
        %s288 = ssub.s32 75, %s287
        %p289 = scmp.lt.s32.totalorder %s288, 48
        %s290 = scalar_select %p289, %s288, 48
        %s291 = smul.u32 8, %s290
        %p292 = scmp.lt.s32.totalorder %s287, 74
        %s293 = scalar_select %p292, %s287, 74
        %s294 = smul.addr %s293, 8
        %s295 = scalar_lea.vmem %s0, %s294
        %s296 = smul.u32 48, %s23
        %s297 = ssub.s32 75, %s296
        %p298 = scmp.lt.s32.totalorder %s297, 48
        %s299 = scalar_select %p298, %s297, 48
        %s300 = smul.u32 8, %s299
        %s301 = smul.u32 3, %s23
        %s302 = ssub.s32 5, %s301
        %p303 = scmp.lt.s32.totalorder %s302, 3
        %s304 = scalar_select %p303, %s302, 3
        %v305 = vld [vmem:[%s295] sm:$0xff]
        %v306 = vld [vmem:[%s295 + $0x8] sm:$0xff]
        %v307 = vld [vmem:[%s295 + $0x10] sm:$0xff]
        %v308 = vld [vmem:[%s295 + $0x18] sm:$0xff]
        %v309 = vld [vmem:[%s295 + $0x20] sm:$0xff]
        %v310 = vld [vmem:[%s295 + $0x28] sm:$0xff]
        %v311 = vld [vmem:[%s295 + $0x30] sm:$0xff]
        %v312 = vld [vmem:[%s295 + $0x38] sm:$0xff]
        %v313 = vld [vmem:[%s295 + $0x40] sm:$0xff]
        %v314 = vld [vmem:[%s295 + $0x48] sm:$0xff]
        %v315 = vld [vmem:[%s295 + $0x50] sm:$0xff]
        %v316 = vld [vmem:[%s295 + $0x58] sm:$0xff]
        %v317 = vld [vmem:[%s295 + $0x60] sm:$0xff]
        %v318 = vld [vmem:[%s295 + $0x68] sm:$0xff]
        %v319 = vld [vmem:[%s295 + $0x70] sm:$0xff]
        %v320 = vld [vmem:[%s295 + $0x78] sm:$0xff]
        %v321 = vld [vmem:[%s295 + $0x80] sm:$0xff]
        %v322 = vld [vmem:[%s295 + $0x88] sm:$0xff]
        %v323 = vld [vmem:[%s295 + $0x90] sm:$0xff]
        %v324 = vld [vmem:[%s295 + $0x98] sm:$0xff]
        %v325 = vld [vmem:[%s295 + $0xa0] sm:$0xff]
        %v326 = vld [vmem:[%s295 + $0xa8] sm:$0xff]
        %v327 = vld [vmem:[%s295 + $0xb0] sm:$0xff]
        %v328 = vld [vmem:[%s295 + $0xb8] sm:$0xff]
        %v329 = vld [vmem:[%s295 + $0xc0] sm:$0xff]
        %v330 = vld [vmem:[%s295 + $0xc8] sm:$0xff]
        %v331 = vld [vmem:[%s295 + $0xd0] sm:$0xff]
        %v332 = vld [vmem:[%s295 + $0xd8] sm:$0xff]
        %v333 = vld [vmem:[%s295 + $0xe0] sm:$0xff]
        %v334 = vld [vmem:[%s295 + $0xe8] sm:$0xff]
        %v335 = vld [vmem:[%s295 + $0xf0] sm:$0xff]
        %v336 = vld [vmem:[%s295 + $0xf8] sm:$0xff]
        %v337 = vld [vmem:[%s295 + $0x100] sm:$0xff]
        %v338 = vld [vmem:[%s295 + $0x108] sm:$0xff]
        %v339 = vld [vmem:[%s295 + $0x110] sm:$0xff]
        %v340 = vld [vmem:[%s295 + $0x118] sm:$0xff]
        %v341 = vld [vmem:[%s295 + $0x120] sm:$0xff]
        %v342 = vld [vmem:[%s295 + $0x128] sm:$0xff]
        %v343 = vld [vmem:[%s295 + $0x130] sm:$0xff]
        %v344 = vld [vmem:[%s295 + $0x138] sm:$0xff]
        %v345 = vld [vmem:[%s295 + $0x140] sm:$0xff]
        %v346 = vld [vmem:[%s295 + $0x148] sm:$0xff]
        %v347 = vld [vmem:[%s295 + $0x150] sm:$0xff]
        %v348 = vld [vmem:[%s295 + $0x158] sm:$0xff]
        %v349 = vld [vmem:[%s295 + $0x160] sm:$0xff]
        %v350 = vld [vmem:[%s295 + $0x168] sm:$0xff]
        %v351 = vld [vmem:[%s295 + $0x170] sm:$0xff]
        %v352 = vld [vmem:[%s295 + $0x178] sm:$0xff]
        %v353 = vld [vmem:[%s1] sm:$0xff]
        %v354 = vld [vmem:[%s1 + $0x8] sm:$0xff]
        %v355 = vld [vmem:[%s1 + $0x10] sm:$0xff]
        %v356 = vld [vmem:[%s1 + $0x18] sm:$0xff]
        %v357 = vld [vmem:[%s2] sm:$0xff]
        %v358 = vld [vmem:[%s2 + $0x8] sm:$0xff]
        %v359 = vld [vmem:[%s2 + $0x10] sm:$0xff]
        %v360 = vld [vmem:[%s2 + $0x18] sm:$0xff]
        %362 = vset.pattern.permute.xlu0 0
        %363 = vperm.xlu0 %362, %v357
        %v364 = vpop.permute.xlu0 %363
        %367 = vset.pattern.permute.xlu0 0
        %368 = vperm.xlu0 %367, %v358
        %v369 = vpop.permute.xlu0 %368
        %372 = vset.pattern.permute.xlu0 0
        %373 = vperm.xlu0 %372, %v359
        %v374 = vpop.permute.xlu0 %373
        %377 = vset.pattern.permute.xlu0 0
        %378 = vperm.xlu0 %377, %v360
        %v379 = vpop.permute.xlu0 %378
        %vm381 = vcmask 130048
        %v383 = vsel %vm381, %v353, 0
        %v386 = vsel %vm381, %v354, 0
        %v389 = vsel %vm381, %v355, 0
        %v392 = vsel %vm381, %v356, 0
        %v395 = vsel %vm381, %v305, 0
        %v398 = vsel %vm381, %v306, 0
        %v401 = vsel %vm381, %v307, 0
        %v404 = vsel %vm381, %v308, 0
        %v407 = vsel %vm381, %v309, 0
        %v410 = vsel %vm381, %v310, 0
        %v413 = vsel %vm381, %v311, 0
        %v416 = vsel %vm381, %v312, 0
        %v419 = vsel %vm381, %v313, 0
        %v422 = vsel %vm381, %v314, 0
        %v425 = vsel %vm381, %v315, 0
        %v428 = vsel %vm381, %v316, 0
        %v431 = vsel %vm381, %v317, 0
        %v434 = vsel %vm381, %v318, 0
        %v437 = vsel %vm381, %v319, 0
        %v440 = vsel %vm381, %v320, 0
        %v443 = vsel %vm381, %v321, 0
        %v446 = vsel %vm381, %v322, 0
        %v449 = vsel %vm381, %v323, 0
        %v452 = vsel %vm381, %v324, 0
        %v455 = vsel %vm381, %v325, 0
        %v458 = vsel %vm381, %v326, 0
        %v461 = vsel %vm381, %v327, 0
        %v464 = vsel %vm381, %v328, 0
        %v467 = vsel %vm381, %v329, 0
        %v470 = vsel %vm381, %v330, 0
        %v473 = vsel %vm381, %v331, 0
        %v476 = vsel %vm381, %v332, 0
        %v479 = vsel %vm381, %v333, 0
        %v482 = vsel %vm381, %v334, 0
        %v485 = vsel %vm381, %v335, 0
        %v488 = vsel %vm381, %v336, 0
        %v491 = vsel %vm381, %v337, 0
        %v494 = vsel %vm381, %v338, 0
        %v497 = vsel %vm381, %v339, 0
        %v500 = vsel %vm381, %v340, 0
        %v503 = vsel %vm381, %v341, 0
        %v506 = vsel %vm381, %v342, 0
        %v509 = vsel %vm381, %v343, 0
        %v512 = vsel %vm381, %v344, 0
        %v515 = vsel %vm381, %v345, 0
        %v518 = vsel %vm381, %v346, 0
        %v521 = vsel %vm381, %v347, 0
        %v524 = vsel %vm381, %v348, 0
        %v527 = vsel %vm381, %v349, 0
        %v530 = vsel %vm381, %v350, 0
        %v533 = vsel %vm381, %v351, 0
        %v536 = vsel %vm381, %v352, 0
        %538 = vmatpush.xpose.msra.mxu0 %v440
        %539 = vmatpush.xpose.msra.mxu0 %v437
        %540 = vmatpush.xpose.msra.mxu0 %v434
        %541 = vmatpush.xpose.msra.mxu0 %v431
        %542 = vmatpush.xpose.msra.mxu0 %v428
        %543 = vmatpush.xpose.msra.mxu0 %v425
        %544 = vmatpush.xpose.msra.mxu0 %v422
        %545 = vmatpush.xpose.msra.mxu0 %v419
        %546 = vmatpush.xpose.msra.mxu0 %v416
        %547 = vmatpush.xpose.msra.mxu0 %v413
        %548 = vmatpush.xpose.msra.mxu0 %v410
        %549 = vmatpush.xpose.msra.mxu0 %v407
        %550 = vmatpush.xpose.msra.mxu0 %v404
        %551 = vmatpush.xpose.msra.mxu0 %v401
        %552 = vmatpush.xpose.msra.mxu0 %v398
        %553 = vmatpush.xpose.msra.mxu0 %v395
        %554 = vmatmul.f32.gmra.mxu0 %v383
        %v555 = vpop.f32.mrf.mxu0
        %v556 = vadd.f32 %v364, %v555
        %557 = vmatmul.f32.gmra.mxu0 %v386
        %v558 = vpop.f32.mrf.mxu0
        %v559 = vadd.f32 %v369, %v558
        %560 = vmatmul.f32.gmra.mxu0 %v389
        %v561 = vpop.f32.mrf.mxu0
        %v562 = vadd.f32 %v374, %v561
        %563 = vmatmul.f32.gmra.mxu0 %v392
        %v564 = vpop.f32.mrf.mxu0
        %v565 = vadd.f32 %v379, %v564
        %566 = vdwg.mxu0
        %567 = vmatpush.xpose.msra.mxu0 %v488
        %568 = vmatpush.xpose.msra.mxu0 %v485
        %569 = vmatpush.xpose.msra.mxu0 %v482
        %570 = vmatpush.xpose.msra.mxu0 %v479
        %571 = vmatpush.xpose.msra.mxu0 %v476
        %572 = vmatpush.xpose.msra.mxu0 %v473
        %573 = vmatpush.xpose.msra.mxu0 %v470
        %574 = vmatpush.xpose.msra.mxu0 %v467
        %575 = vmatpush.xpose.msra.mxu0 %v464
        %576 = vmatpush.xpose.msra.mxu0 %v461
        %577 = vmatpush.xpose.msra.mxu0 %v458
        %578 = vmatpush.xpose.msra.mxu0 %v455
        %579 = vmatpush.xpose.msra.mxu0 %v452
        %580 = vmatpush.xpose.msra.mxu0 %v449
        %581 = vmatpush.xpose.msra.mxu0 %v446
        %582 = vmatpush.xpose.msra.mxu0 %v443
        %583 = vmatmul.f32.gmra.mxu0 %v383
        %v584 = vpop.f32.mrf.mxu0
        %v585 = vadd.f32 %v364, %v584
        %586 = vmatmul.f32.gmra.mxu0 %v386
        %v587 = vpop.f32.mrf.mxu0
        %v588 = vadd.f32 %v369, %v587
        %589 = vmatmul.f32.gmra.mxu0 %v389
        %v590 = vpop.f32.mrf.mxu0
        %v591 = vadd.f32 %v374, %v590
        %592 = vmatmul.f32.gmra.mxu0 %v392
        %v593 = vpop.f32.mrf.mxu0
        %v594 = vadd.f32 %v379, %v593
        %595 = vdwg.mxu0
        %596 = vmatpush.xpose.msra.mxu0 %v536
        %597 = vmatpush.xpose.msra.mxu0 %v533
        %598 = vmatpush.xpose.msra.mxu0 %v530
        %599 = vmatpush.xpose.msra.mxu0 %v527
        %600 = vmatpush.xpose.msra.mxu0 %v524
        %601 = vmatpush.xpose.msra.mxu0 %v521
        %602 = vmatpush.xpose.msra.mxu0 %v518
        %603 = vmatpush.xpose.msra.mxu0 %v515
        %604 = vmatpush.xpose.msra.mxu0 %v512
        %605 = vmatpush.xpose.msra.mxu0 %v509
        %606 = vmatpush.xpose.msra.mxu0 %v506
        %607 = vmatpush.xpose.msra.mxu0 %v503
        %608 = vmatpush.xpose.msra.mxu0 %v500
        %609 = vmatpush.xpose.msra.mxu0 %v497
        %610 = vmatpush.xpose.msra.mxu0 %v494
        %611 = vmatpush.xpose.msra.mxu0 %v491
        %612 = vmatmul.f32.gmra.mxu0 %v383
        %v613 = vpop.f32.mrf.mxu0
        %v614 = vadd.f32 %v364, %v613
        %615 = vmatmul.f32.gmra.mxu0 %v386
        %v616 = vpop.f32.mrf.mxu0
        %v617 = vadd.f32 %v369, %v616
        %618 = vmatmul.f32.gmra.mxu0 %v389
        %v619 = vpop.f32.mrf.mxu0
        %v620 = vadd.f32 %v374, %v619
        %621 = vmatmul.f32.gmra.mxu0 %v392
        %v622 = vpop.f32.mrf.mxu0
        %v623 = vadd.f32 %v379, %v622
        %624 = vdwg.mxu0
        %v625 = vmax.f32 %v556, 0.0
        %v626 = vmax.f32 %v585, 0.0
        %v627 = vmax.f32 %v614, 0.0
        %v628 = vmax.f32 %v559, 0.0
        %v629 = vmax.f32 %v588, 0.0
        %v630 = vmax.f32 %v617, 0.0
        %v631 = vmax.f32 %v562, 0.0
        %v632 = vmax.f32 %v591, 0.0
        %v633 = vmax.f32 %v620, 0.0
        %v634 = vmax.f32 %v565, 0.0
        %v635 = vmax.f32 %v594, 0.0
        %v636 = vmax.f32 %v623, 0.0
        %v637 = vld [vmem:[%s3] sm:$0xff]
        %v638 = vld [vmem:[%s3 + $0x8] sm:$0xff]
        %v639 = vld [vmem:[%s3 + $0x10] sm:$0xff]
        %v640 = vld [vmem:[%s3 + $0x18] sm:$0xff]
        %v641 = vld [vmem:[%s4] sm:$0xff]
        %v642 = vld [vmem:[%s4 + $0x8] sm:$0xff]
        %v643 = vld [vmem:[%s4 + $0x10] sm:$0xff]
        %v644 = vld [vmem:[%s4 + $0x18] sm:$0xff]
        %646 = vset.pattern.permute.xlu0 0
        %647 = vperm.xlu0 %646, %v641
        %v648 = vpop.permute.xlu0 %647
        %651 = vset.pattern.permute.xlu0 0
        %652 = vperm.xlu0 %651, %v642
        %v653 = vpop.permute.xlu0 %652
        %656 = vset.pattern.permute.xlu0 0
        %657 = vperm.xlu0 %656, %v643
        %v658 = vpop.permute.xlu0 %657
        %661 = vset.pattern.permute.xlu0 0
        %662 = vperm.xlu0 %661, %v644
        %v663 = vpop.permute.xlu0 %662
        %vm665 = vcmask 261120
        %v667 = vsel %vm665, %v637, 0
        %v670 = vsel %vm665, %v638, 0
        %v673 = vsel %vm665, %v639, 0
        %v676 = vsel %vm665, %v640, 0
        %678 = vmatpush.msra.mxu0 0.0
        %679 = vmatpush.msra.mxu0 0.0
        %680 = vmatpush.msra.mxu0 0.0
        %681 = vmatpush.msra.mxu0 0.0
        %682 = vmatpush.msra.mxu0 0.0
        %683 = vmatpush.msra.mxu0 0.0
        %684 = vmatpush.msra.mxu0 0.0
        %685 = vmatpush.msra.mxu0 0.0
        %686 = vmatpush.msra.mxu0 0.0
        %687 = vmatpush.msra.mxu0 0.0
        %688 = vmatpush.msra.mxu0 0.0
        %689 = vmatpush.msra.mxu0 0.0
        %690 = vmatpush.msra.mxu0 %v634
        %691 = vmatpush.msra.mxu0 %v631
        %692 = vmatpush.msra.mxu0 %v628
        %693 = vmatpush.msra.mxu0 %v625
        %694 = vmatmul.f32.gmra.mxu0 %v667
        %v695 = vpop.f32.mrf.mxu0
        %v696 = vadd.f32 %v648, %v695
        %697 = vmatmul.f32.gmra.mxu0 %v670
        %v698 = vpop.f32.mrf.mxu0
        %v699 = vadd.f32 %v653, %v698
        %700 = vmatmul.f32.gmra.mxu0 %v673
        %v701 = vpop.f32.mrf.mxu0
        %v702 = vadd.f32 %v658, %v701
        %703 = vmatmul.f32.gmra.mxu0 %v676
        %v704 = vpop.f32.mrf.mxu0
        %v705 = vadd.f32 %v663, %v704
        %706 = vdwg.mxu0
        %707 = vmatpush.msra.mxu0 0.0
        %708 = vmatpush.msra.mxu0 0.0
        %709 = vmatpush.msra.mxu0 0.0
        %710 = vmatpush.msra.mxu0 0.0
        %711 = vmatpush.msra.mxu0 0.0
        %712 = vmatpush.msra.mxu0 0.0
        %713 = vmatpush.msra.mxu0 0.0
        %714 = vmatpush.msra.mxu0 0.0
        %715 = vmatpush.msra.mxu0 0.0
        %716 = vmatpush.msra.mxu0 0.0
        %717 = vmatpush.msra.mxu0 0.0
        %718 = vmatpush.msra.mxu0 0.0
        %719 = vmatpush.msra.mxu0 %v635
        %720 = vmatpush.msra.mxu0 %v632
        %721 = vmatpush.msra.mxu0 %v629
        %722 = vmatpush.msra.mxu0 %v626
        %723 = vmatmul.f32.gmra.mxu0 %v667
        %v724 = vpop.f32.mrf.mxu0
        %v725 = vadd.f32 %v648, %v724
        %726 = vmatmul.f32.gmra.mxu0 %v670
        %v727 = vpop.f32.mrf.mxu0
        %v728 = vadd.f32 %v653, %v727
        %729 = vmatmul.f32.gmra.mxu0 %v673
        %v730 = vpop.f32.mrf.mxu0
        %v731 = vadd.f32 %v658, %v730
        %732 = vmatmul.f32.gmra.mxu0 %v676
        %v733 = vpop.f32.mrf.mxu0
        %v734 = vadd.f32 %v663, %v733
        %735 = vdwg.mxu0
        %736 = vmatpush.msra.mxu0 0.0
        %737 = vmatpush.msra.mxu0 0.0
        %738 = vmatpush.msra.mxu0 0.0
        %739 = vmatpush.msra.mxu0 0.0
        %740 = vmatpush.msra.mxu0 0.0
        %741 = vmatpush.msra.mxu0 0.0
        %742 = vmatpush.msra.mxu0 0.0
        %743 = vmatpush.msra.mxu0 0.0
        %744 = vmatpush.msra.mxu0 0.0
        %745 = vmatpush.msra.mxu0 0.0
        %746 = vmatpush.msra.mxu0 0.0
        %747 = vmatpush.msra.mxu0 0.0
        %748 = vmatpush.msra.mxu0 %v636
        %749 = vmatpush.msra.mxu0 %v633
        %750 = vmatpush.msra.mxu0 %v630
        %751 = vmatpush.msra.mxu0 %v627
        %752 = vmatmul.f32.gmra.mxu0 %v667
        %v753 = vpop.f32.mrf.mxu0
        %v754 = vadd.f32 %v648, %v753
        %755 = vmatmul.f32.gmra.mxu0 %v670
        %v756 = vpop.f32.mrf.mxu0
        %v757 = vadd.f32 %v653, %v756
        %758 = vmatmul.f32.gmra.mxu0 %v673
        %v759 = vpop.f32.mrf.mxu0
        %v760 = vadd.f32 %v658, %v759
        %761 = vmatmul.f32.gmra.mxu0 %v676
        %v762 = vpop.f32.mrf.mxu0
        %v763 = vadd.f32 %v663, %v762
        %764 = vdwg.mxu0
        %v765 = vmax.f32 %v696, 0.0
        %v766 = vmax.f32 %v725, 0.0
        %v767 = vmax.f32 %v754, 0.0
        %v768 = vmax.f32 %v699, 0.0
        %v769 = vmax.f32 %v728, 0.0
        %v770 = vmax.f32 %v757, 0.0
        %v771 = vmax.f32 %v702, 0.0
        %v772 = vmax.f32 %v731, 0.0
        %v773 = vmax.f32 %v760, 0.0
        %v774 = vmax.f32 %v705, 0.0
        %v775 = vmax.f32 %v734, 0.0
        %v776 = vmax.f32 %v763, 0.0
        %v777 = vld [vmem:[%s5] sm:$0x1]
        %v778 = vld [vmem:[#allocation2] sm:$0x1]
        %780 = vset.pattern.permute.xlu0 0
        %781 = vperm.xlu0 %780, %v778
        %v782 = vpop.permute.xlu0 %781
        %v784 = vperm.slane %v782, 0
        %v786 = vsel %vm665, %v777, 0
        %788 = vmatpush.msra.mxu0 0.0
        %789 = vmatpush.msra.mxu0 0.0
        %790 = vmatpush.msra.mxu0 0.0
        %791 = vmatpush.msra.mxu0 0.0
        %792 = vmatpush.msra.mxu0 0.0
        %793 = vmatpush.msra.mxu0 0.0
        %794 = vmatpush.msra.mxu0 0.0
        %795 = vmatpush.msra.mxu0 0.0
        %796 = vmatpush.msra.mxu0 0.0
        %797 = vmatpush.msra.mxu0 0.0
        %798 = vmatpush.msra.mxu0 0.0
        %799 = vmatpush.msra.mxu0 0.0
        %800 = vmatpush.msra.mxu0 %v774
        %801 = vmatpush.msra.mxu0 %v771
        %802 = vmatpush.msra.mxu0 %v768
        %803 = vmatpush.msra.mxu0 %v765
        %804 = vmatmul.f32.gmra.mxu0 %v786
        %v805 = vpop.f32.mrf.mxu0
        %v806 = vadd.f32 %v784, %v805
        %807 = vdwg.mxu0
        %808 = vmatpush.msra.mxu0 0.0
        %809 = vmatpush.msra.mxu0 0.0
        %810 = vmatpush.msra.mxu0 0.0
        %811 = vmatpush.msra.mxu0 0.0
        %812 = vmatpush.msra.mxu0 0.0
        %813 = vmatpush.msra.mxu0 0.0
        %814 = vmatpush.msra.mxu0 0.0
        %815 = vmatpush.msra.mxu0 0.0
        %816 = vmatpush.msra.mxu0 0.0
        %817 = vmatpush.msra.mxu0 0.0
        %818 = vmatpush.msra.mxu0 0.0
        %819 = vmatpush.msra.mxu0 0.0
        %820 = vmatpush.msra.mxu0 %v775
        %821 = vmatpush.msra.mxu0 %v772
        %822 = vmatpush.msra.mxu0 %v769
        %823 = vmatpush.msra.mxu0 %v766
        %824 = vmatmul.f32.gmra.mxu0 %v786
        %v825 = vpop.f32.mrf.mxu0
        %v826 = vadd.f32 %v784, %v825
        %827 = vdwg.mxu0
        %828 = vmatpush.msra.mxu0 0.0
        %829 = vmatpush.msra.mxu0 0.0
        %830 = vmatpush.msra.mxu0 0.0
        %831 = vmatpush.msra.mxu0 0.0
        %832 = vmatpush.msra.mxu0 0.0
        %833 = vmatpush.msra.mxu0 0.0
        %834 = vmatpush.msra.mxu0 0.0
        %835 = vmatpush.msra.mxu0 0.0
        %836 = vmatpush.msra.mxu0 0.0
        %837 = vmatpush.msra.mxu0 0.0
        %838 = vmatpush.msra.mxu0 0.0
        %839 = vmatpush.msra.mxu0 0.0
        %840 = vmatpush.msra.mxu0 %v776
        %841 = vmatpush.msra.mxu0 %v773
        %842 = vmatpush.msra.mxu0 %v770
        %843 = vmatpush.msra.mxu0 %v767
        %844 = vmatmul.f32.gmra.mxu0 %v786
        %v845 = vpop.f32.mrf.mxu0
        %v846 = vadd.f32 %v784, %v845
        %847 = vdwg.mxu0
        %v851 = vrot.slane %v826, 7
        %v852 = vrot.slane %v846, 6
        %vm853 = vcmask 1040384
        %v854 = vsel %vm853, %v806, %v851
        %vm855 = vcmask 1041408
        %v856 = vsel %vm855, %v854, %v852
        %v858 = vlaneseq
        %vm859 = vcmp.ge.s32.totalorder %v858, 0
        %vm860 = vcmp.lt.s32.totalorder %v858, 384
        %vm861 = vmand %vm859, %vm860
        %862 = vst.msk [vmem:[%s286] sm:$0x7] %vm861, %v856
        %s863 = sand.u32 %s183, 1
        %s864 = scalar_lea.sflag [#allocation4], %s863
        %s865 = sand.u32 %s183, 1
        %s866 = smul.addr %s865, 3
        %s867 = scalar_lea.vmem [#allocation3], %s866
        // Predicated region
        $region49: #{tpu_custom_call.1} parent=47 // pred_check
          %p868 = pneg %p193
        $region50: #{tpu_custom_call.1} parent=47 // pred_check_branch
          %870 = sbr.rel (%p868) target = $region52
        $region51: #{tpu_custom_call.1} parent=47 // pred_region
          %s871 = smul.u32 3, %s23
          %s872 = ssub.s32 5, %s871
          %p873 = scmp.lt.s32.totalorder %s872, 3
          %s874 = scalar_select %p873, %s872, 3
          %s875 = ssub.s32 3, %s874
          %s876 = sshll.u32 %s875, 4
          %877 = vsyncadd %s864, %s876
          %p878 = scmp.ne.s32.totalorder 0, %s874
          %s879 = scalar_lea.hbm %s7, %s871
          %s880 = sshll.u32 %s874, 4
          %s881 = sshll.u32 %s867, 4
          %s882 = int_to_ptr.vmem [resolvable:$true] %s881
          %s883 = sshll.u32 %s879, 4
          %s884 = int_to_ptr.hbm [resolvable:$true] %s883
          %886 = dma.vmem_to_hbm [thread:$0]  (%p878), %s882, %s880, %s884, %s864
        $region52: #{tpu_custom_call.1} parent=47 // pred_fallthru
          _
      $region48: #{tpu_custom_call.1} parent=5 // pred_fallthru
        _
      %p887 = scmp.le.s32.totalorder 2, %s18
      // Predicated region
      $region53: #{tpu_custom_call.1} parent=5 // pred_check
        %p888 = pneg %p887
      $region54: #{tpu_custom_call.1} parent=5 // pred_check_branch
        %890 = sbr.rel (%p888) target = $region56
      $region55: #{tpu_custom_call.1} parent=5 // pred_region
        %s891 = ssub.s32 %s18, 2
        // Predicated region
        $region57: #{tpu_custom_call.1} parent=55 // pred_check
          %p892 = pneg %p199
        $region58: #{tpu_custom_call.1} parent=55 // pred_check_branch
          %894 = sbr.rel (%p892) target = $region60
        $region59: #{tpu_custom_call.1} parent=55 // pred_region
          %s895 = sand.u32 %s184, 1
          %s896 = scalar_lea.sflag [#allocation4], %s895
          %s897 = sand.u32 %s184, 1
          %s898 = smul.addr %s897, 3
          %s899 = scalar_lea.vmem [#allocation3], %s898
          %901 = dma.done %s896, 48
        $region60: #{tpu_custom_call.1} parent=55 // pred_fallthru
          _
      $region56: #{tpu_custom_call.1} parent=5 // pred_fallthru
        _
    $region6: #{tpu_custom_call.1} parent=1 // loop_footer
      %s22 = sadd.s32 1, %s18
    $region7: #{tpu_custom_call.1} parent=1 // loop_footer_branch
      %17 = sbr.rel target = $region3
    $region8: #{tpu_custom_call.1} parent=1 // loop_exit
      _
    %902 = vsyncpa [#allocation4], 1
    %s903 = scalar_lea.sflag [#allocation4], 1
    %904 = vsyncpa %s903, 1

</llo_original>
